<compile_context>
chip_gen: v7x
topology: tpu7x:2x2x1
jax: 0.10.0
libtpu: 0.0.40
codegen_flags: <defaults>
</compile_context>

<pallas_src>
import jax
import jax.numpy as jnp
from jax.experimental import pallas as pl
from jax.experimental.pallas import tpu as pltpu


# --------------------------------------------------------------------------
# Pallas kernel: 1x1 conv == per-pixel channel mixing
# --------------------------------------------------------------------------
def _conv1x1_kernel(w_ref, x_ref, o_ref):
    # w_ref : (Cp, Cp)          mixing matrix (output-channel major), resident
    # x_ref : (NB, Cp, HW_T)    NB batch slabs; channels on sublanes, pixels on lanes
    # o_ref : (NB, Cp, HW_T)
    w = w_ref[...]
    nb = x_ref.shape[0]

    def one(b):
        o_ref[b] = jnp.dot(
            w, x_ref[b], preferred_element_type=jnp.float32
        ).astype(o_ref.dtype)

    if nb <= 8:
        # short, fixed trip count -> unroll for LLO scheduler visibility
        for b in range(nb):
            one(b)
    else:
        @pl.loop(0, nb)
        def _(b):
            one(b)


_TARGET_BLOCK_BYTES = 2 * 1024 * 1024  # ~2 MiB input block (review: 1-8 MiB)


def _choose_tiles(Np, Cp, HW, itemsize=4, target=_TARGET_BLOCK_BYTES):
    """Pick (NB, HW_T): MiB-scale blocks, lane dim a multiple of 128 when tiled."""
    # Lane tiling only when HW is 128-aligned and a single slab exceeds target.
    hw_t = HW
    if HW % 128 == 0 and Cp * HW * itemsize > target:
        best = 128
        d = 128
        while d <= HW:
            if HW % d == 0 and Cp * d * itemsize <= target:
                best = d
            d += 128
        hw_t = best
    # Batch tiling: largest divisor of Np that keeps the block under target.
    nb = 1
    for d in range(1, Np + 1):
        if Np % d == 0 and d * Cp * hw_t * itemsize <= target:
            nb = d
    # Keep at least 2 grid steps so both v7x TensorCores get work (free on v5e/v6e).
    if (Np // nb) * (HW // hw_t) < 2 and Np >= 2:
        for d in range(Np // 2, 0, -1):
            if Np % d == 0:
                nb = d
                break
    return nb, hw_t


def _conv1x1_pallas(x_flat, weight):
    """x_flat: (Np, Cp, HW) f32, weight: (Cp, Cp) f32 -> (Np, Cp, HW) f32."""
    Np, Cp, HW = x_flat.shape
    nb, hw_t = _choose_tiles(Np, Cp, HW)
    grid = (Np // nb, HW // hw_t)

    flops = 2 * Np * Cp * Cp * HW
    bytes_accessed = 2 * Np * Cp * HW * 4 + Cp * Cp * 4

    return pl.pallas_call(
        _conv1x1_kernel,
        out_shape=jax.ShapeDtypeStruct((Np, Cp, HW), jnp.float32),
        grid=grid,
        in_specs=[
            pl.BlockSpec((Cp, Cp), lambda n, h: (0, 0)),          # weight, resident
            pl.BlockSpec((nb, Cp, hw_t), lambda n, h: (n, 0, h)),  # input slab
        ],
        out_specs=pl.BlockSpec((nb, Cp, hw_t), lambda n, h: (n, 0, h)),
        compiler_params=pltpu.CompilerParams(
            dimension_semantics=("parallel", "parallel"),
            vmem_limit_bytes=32 * 1024 * 1024,
        ),
        cost_estimate=pl.CostEstimate(
            flops=flops, transcendentals=0, bytes_accessed=bytes_accessed),
    )(weight, x_flat)


# --------------------------------------------------------------------------
# Wrapper reproducing InvertibleConv1x1.forward
# --------------------------------------------------------------------------
def _get_weight(params, C, h, w, reverse, LU_decomposed):
    """Mirror of InvertibleConv1x1.get_weight (plain-JAX glue, CxC only)."""
    if not LU_decomposed:
        W = params["weight"].astype(jnp.float32)
        dlogdet = jnp.linalg.slogdet(W)[1] * (h * w)
        weight = jnp.linalg.inv(W) if reverse else W
    else:
        p = params["p"].astype(jnp.float32)
        sign_s = params["sign_s"].astype(jnp.float32)
        lower = params["lower"].astype(jnp.float32)
        log_s = params["log_s"].astype(jnp.float32)
        upper = params["upper"].astype(jnp.float32)
        l_mask = jnp.tril(jnp.ones((C, C), jnp.float32), -1)
        eye = jnp.eye(C, dtype=jnp.float32)
        L = lower * l_mask + eye
        U = upper * l_mask.T + jnp.diag(sign_s * jnp.exp(log_s))
        dlogdet = jnp.sum(log_s) * (h * w)
        if reverse:
            weight = (jnp.linalg.inv(U)
                      @ jnp.linalg.inv(L)
                      @ jnp.linalg.inv(p))
        else:
            weight = p @ L @ U
    return weight, dlogdet


def invertible_conv1x1_forward(x_nchw, params, logdet=None, reverse=False,
                               LU_decomposed=False):
    """InvertibleConv1x1.forward(input, logdet, reverse) -> (z, logdet)."""
    x_nchw = x_nchw.astype(jnp.float32)
    N, C, H, W = x_nchw.shape

    weight, dlogdet = _get_weight(params, C, H, W, reverse, LU_decomposed)

    # Sublane packing: with C < 8 every (8,128) f32 tile is partially padded.
    # Fold `pack` batch elements onto the sublane axis and apply the
    # block-diagonal kron(eye(pack), W) so tiles are full.
    pack = 1
    if C < 8 and 8 % C == 0 and N % (8 // C) == 0:
        pack = 8 // C
    Cp = pack * C
    if pack == 1:
        w_packed = weight
    else:
        w_packed = jnp.kron(jnp.eye(pack, dtype=weight.dtype), weight)

    # channels on sublanes, pixels on lanes
    x_flat = x_nchw.reshape(N // pack, Cp, H * W)
    z = _conv1x1_pallas(x_flat, w_packed).reshape(N, C, H, W)

    if logdet is None:
        logdet = 0.0
    logdet = logdet - dlogdet if reverse else logdet + dlogdet
    return z, logdet


# --------------------------------------------------------------------------
# Pure-JAX reference
# --------------------------------------------------------------------------
def reference(x_nchw, params, logdet, reverse, LU_decomposed):
    N, C, H, W = x_nchw.shape
    weight, dlogdet = _get_weight(params, C, H, W, reverse, LU_decomposed)
    z = jnp.einsum("oc,nchw->nohw", weight, x_nchw.astype(jnp.float32))
    if logdet is None:
        logdet = 0.0
    logdet = logdet - dlogdet if reverse else logdet + dlogdet
    return z, logdet


# --------------------------------------------------------------------------
if __name__ == "__main__":
    key = jax.random.PRNGKey(0)
    k_x, k_w, k_l, k_u, k_s, k_x2 = jax.random.split(key, 6)

    N, C, H, W = 2, 4, 16, 16          # num_channels = 4, H*W = 256 lanes
    x = jax.random.normal(k_x, (N, C, H, W), jnp.float32)

    # ---- non-LU parameterisation: orthogonal init via QR (as in the module)
    w_init = jnp.linalg.qr(jax.random.normal(k_w, (C, C), jnp.float32))[0]
    params_plain = {"weight": w_init}

    z_out, ld_out = invertible_conv1x1_forward(
        x, params_plain, logdet=None, reverse=False, LU_decomposed=False)
    jax.block_until_ready((z_out, ld_out))
    z_ref, ld_ref = reference(x, params_plain, None, False, False)
    assert jnp.allclose(z_out, z_ref, rtol=1e-4, atol=1e-4), "z mismatch (plain)"
    assert jnp.allclose(ld_out, ld_ref, rtol=1e-4, atol=1e-4), "logdet mismatch (plain)"

    # ---- LU parameterisation: build p / lower / upper / log_s / sign_s directly
    perm = jnp.eye(C, dtype=jnp.float32)[::-1]                  # a permutation matrix
    lower = 0.3 * jax.random.normal(k_l, (C, C), jnp.float32)   # strict-lower part used
    upper = 0.3 * jax.random.normal(k_u, (C, C), jnp.float32)   # strict-upper part used
    log_s = 0.2 * jax.random.normal(k_s, (C,), jnp.float32)
    sign_s = jnp.where(jnp.arange(C) % 2 == 0, 1.0, -1.0).astype(jnp.float32)
    params_lu = {"p": perm, "lower": lower, "upper": upper,
                 "log_s": log_s, "sign_s": sign_s}

    z_lu, ld_lu = invertible_conv1x1_forward(
        x, params_lu, logdet=None, reverse=False, LU_decomposed=True)
    jax.block_until_ready((z_lu, ld_lu))
    z_lu_ref, ld_lu_ref = reference(x, params_lu, None, False, True)
    assert jnp.allclose(z_lu, z_lu_ref, rtol=1e-4, atol=1e-4), "z mismatch (LU)"
    assert jnp.allclose(ld_lu, ld_lu_ref, rtol=1e-4, atol=1e-4), "logdet mismatch (LU)"

    # ---- reverse path round-trip: reverse(forward(x)) ~= x, logdet cancels
    x_back, ld_back = invertible_conv1x1_forward(
        z_out, params_plain, logdet=ld_out, reverse=True, LU_decomposed=False)
    jax.block_until_ready((x_back, ld_back))
    assert jnp.allclose(x_back, x, rtol=1e-3, atol=1e-3), "roundtrip mismatch"
    assert jnp.allclose(ld_back, 0.0, atol=1e-3), "logdet roundtrip mismatch"

    # ---- unpacked path (N not divisible by pack -> pack=1, Cp=C<8 blocks)
    N2, H2, W2 = 3, 8, 8
    x2 = jax.random.normal(k_x2, (N2, C, H2, W2), jnp.float32)
    z2, ld2 = invertible_conv1x1_forward(
        x2, params_plain, logdet=None, reverse=False, LU_decomposed=False)
    jax.block_until_ready((z2, ld2))
    z2_ref, ld2_ref = reference(x2, params_plain, None, False, False)
    assert jnp.allclose(z2, z2_ref, rtol=1e-4, atol=1e-4), "z mismatch (no-pack)"
    assert jnp.allclose(ld2, ld2_ref, rtol=1e-4, atol=1e-4), "logdet mismatch (no-pack)"

    print("KERNEL_OK")
</pallas_src>

<mosaic_0001>
module attributes {stable_mosaic.version = 11 : i64} {
  func.func @_conv1x1_kernel(%arg0: i32, %arg1: i32, %arg2: memref<8x8xf32, #tpu.memory_space<vmem>>, %arg3: memref<1x8x256xf32, #tpu.memory_space<vmem>>, %arg4: memref<1x8x256xf32, #tpu.memory_space<vmem>>) attributes {dimension_semantics = [#tpu.dimension_semantics<parallel>, #tpu.dimension_semantics<parallel>], iteration_bounds = array<i64: 1, 1>, scalar_prefetch = 0 : i64, scratch_operands = 0 : i64, tpu.core_type = #tpu.core_type<tc>, window_params = [{pipeline_mode = #tpu.pipeline_mode<synchronous>, transform_indices = @transform_0, window_bounds = array<i64: 8, 8>}, {transform_indices = @transform_1, window_bounds = array<i64: 1, 8, 256>}, {transform_indices = @transform_2, window_bounds = array<i64: 1, 8, 256>}]} {
    %c0 = arith.constant 0 : index
    %c0_0 = arith.constant 0 : index
    %0 = vector.load %arg2[%c0, %c0_0] : memref<8x8xf32, #tpu.memory_space<vmem>>, vector<8x8xf32>
    %c0_1 = arith.constant 0 : index
    %c0_2 = arith.constant 0 : index
    %c0_3 = arith.constant 0 : index
    %1 = vector.load %arg3[%c0_1, %c0_2, %c0_3] : memref<1x8x256xf32, #tpu.memory_space<vmem>>, vector<1x8x256xf32>
    %2 = vector.shape_cast %1 : vector<1x8x256xf32> to vector<8x256xf32>
    %cst = arith.constant dense<0.000000e+00> : vector<8x256xf32>
    %3 = tpu.matmul %0, %2, %cst {dimension_numbers = #tpu.dot_dimension_numbers<[1], [0], [0], [1], [0, 0, 1, 1], [], []>} : vector<8x8xf32>, vector<8x256xf32>, vector<8x256xf32> -> vector<8x256xf32>
    %c0_4 = arith.constant 0 : index
    %c0_5 = arith.constant 0 : index
    %c0_6 = arith.constant 0 : index
    %4 = vector.load %arg4[%c0_4, %c0_5, %c0_6] : memref<1x8x256xf32, #tpu.memory_space<vmem>>, vector<1x8x256xf32>
    %5 = vector.shape_cast %4 : vector<1x8x256xf32> to vector<8x256xf32>
    %6 = vector.shape_cast %3 : vector<8x256xf32> to vector<1x8x256xf32>
    tpu.vector_store %arg4[%c0_4, %c0_5, %c0_6], %6 {strides = array<i32>} : memref<1x8x256xf32, #tpu.memory_space<vmem>>, vector<1x8x256xf32>,
    return
  }
  func.func @transform_0(%arg0: i32, %arg1: i32) -> (i32, i32) {
    %c0_i32 = arith.constant 0 : i32
    %c0_i32_0 = arith.constant 0 : i32
    %c0_i32_1 = arith.constant 0 : i32
    return %c0_i32, %c0_i32_0 : i32, i32
  }
  func.func @transform_1(%arg0: i32, %arg1: i32) -> (i32, i32, i32) {
    %c0_i32 = arith.constant 0 : i32
    %c0_i32_0 = arith.constant 0 : i32
    return %arg0, %c0_i32, %arg1 : i32, i32, i32
  }
  func.func @transform_2(%arg0: i32, %arg1: i32) -> (i32, i32, i32) {
    %c0_i32 = arith.constant 0 : i32
    %c0_i32_0 = arith.constant 0 : i32
    return %arg0, %c0_i32, %arg1 : i32, i32, i32
  }
}

</mosaic_0001>

<llo_original>
// kernel: tpu_custom_call.1
$region0: #{tpu_custom_call.1}
  #allocation0 [shape = 'u32[]', space=smem, size = 0x4, offset = 0x4, fixed_abs, tag = 'smem constant byte address 0x4 - core index']
  #allocation1 [shape = 'u32[144,128]{1,0:T(1,128)}', space=vmem, size = 0x12000, scoped, tag = 'internal scratch']
  %s0 = inlined_call_operand.hbm [shape: f32[8,8], index: 0, kind: input, shape index: {}]
  %s1 = inlined_call_operand.hbm [shape: f32[1,8,256], index: 1, kind: input, shape index: {}]
  %s2 = inlined_call_operand.hbm [shape: f32[1,8,256], index: 2, kind: output, shape index: {}]
  %s3 = sld [smem:[#allocation0]]
  $region26: #{tpu_custom_call.1} parent=0
    _
  %s5 = ssub.s32 1, %s3
  %s6 = scalar_select 0, %s5, %s3
  $region1: #{tpu_custom_call.1} parent=0
    #allocation2 [shape = 'u8[4096]{0}', space=vmem, size = 0x1000, scoped, tag = 'input window, operand 0, single buffered']
    #allocation3 [shape = 's32[1]{0}', space=sflag, size = 0x4, scoped, tag = 'scoped memory for tpu_custom_call.1']
    #allocation4 [shape = 's32[1]{0}', space=sflag, size = 0x4, scoped, tag = 'scoped memory for tpu_custom_call.1']
    #allocation5 [shape = 'u8[8192]{0}', space=vmem, size = 0x2000, scoped, tag = 'input window, operand 1, single buffered']
    #allocation6 [shape = 's32[1]{0}', space=sflag, size = 0x4, scoped, tag = 'scoped memory for tpu_custom_call.1']
    #allocation7 [shape = 'u8[8192]{0}', space=vmem, size = 0x2000, scoped, tag = 'output window, operand 0, single buffered']
    %7 = vsyncpa [#allocation3], 0
    %8 = vsyncpa [#allocation6], 0
    %9 = vsyncpa [#allocation4], 0
    // Predicated region
    $region2: #{tpu_custom_call.1} parent=1 // pred_check
      _
    $region3: #{tpu_custom_call.1} parent=1 // pred_check_branch
      %11 = sbr.rel (0) target = $region5
    $region4: #{tpu_custom_call.1} parent=1 // pred_region
      %s13 = ssub.s32 128, 128
      %14 = vsyncadd [#allocation3], %s13
      %s16 = sshll.u32 [#allocation2], 4
      %s17 = int_to_ptr.vmem [resolvable:$true] %s16
      %19 = dma.hbm_to_vmem [thread:$0]  %s0, 128, %s17, [#allocation3]
    $region5: #{tpu_custom_call.1} parent=1 // pred_fallthru
      _
    // Predicated region
    $region6: #{tpu_custom_call.1} parent=1 // pred_check
      _
    $region7: #{tpu_custom_call.1} parent=1 // pred_check_branch
      %21 = sbr.rel (0) target = $region9
    $region8: #{tpu_custom_call.1} parent=1 // pred_region
      %s23 = ssub.s32 256, 256
      %24 = vsyncadd [#allocation6], %s23
      %s26 = sshll.u32 [#allocation5], 4
      %s27 = int_to_ptr.vmem [resolvable:$true] %s26
      %29 = dma.hbm_to_vmem [thread:$0]  %s1, 256, %s27, [#allocation6]
    $region9: #{tpu_custom_call.1} parent=1 // pred_fallthru
      _
    // Predicated region
    $region10: #{tpu_custom_call.1} parent=1 // pred_check
      _
    $region11: #{tpu_custom_call.1} parent=1 // pred_check_branch
      %31 = sbr.rel (0) target = $region13
    $region12: #{tpu_custom_call.1} parent=1 // pred_region
      %32 = dma.done [#allocation3], 128
    $region13: #{tpu_custom_call.1} parent=1 // pred_fallthru
      _
    // Predicated region
    $region14: #{tpu_custom_call.1} parent=1 // pred_check
      _
    $region15: #{tpu_custom_call.1} parent=1 // pred_check_branch
      %34 = sbr.rel (0) target = $region17
    $region16: #{tpu_custom_call.1} parent=1 // pred_region
      %35 = dma.done [#allocation6], 256
    $region17: #{tpu_custom_call.1} parent=1 // pred_fallthru
      _
    %v36 = vld [vmem:[#allocation2] sm:$0xff]
    %v37 = vld [vmem:[#allocation5] sm:$0xff]
    %v38 = vld [vmem:[#allocation5 + $0x8] sm:$0xff]
    %vm39 = vcmask 64512
    %v41 = vsel %vm39, %v36, 0
    %43 = vmatprep.subr.mxu0 %v38
    %44 = vmatpush1.msra.mxu0 %v37
    %45 = vmatprep.subr.mxu0 0.0
    %46 = vmatpush1.msra.mxu0 0.0
    %47 = vmatprep.subr.mxu0 0.0
    %48 = vmatpush1.msra.mxu0 0.0
    %49 = vmatprep.subr.mxu0 0.0
    %50 = vmatpush1.msra.mxu0 0.0
    %51 = vmatprep.subr.mxu0 0.0
    %52 = vmatpush1.msra.mxu0 0.0
    %53 = vmatprep.subr.mxu0 0.0
    %54 = vmatpush1.msra.mxu0 0.0
    %55 = vmatprep.subr.mxu0 0.0
    %56 = vmatpush1.msra.mxu0 0.0
    %57 = vmatprep.subr.mxu0 0.0
    %58 = vmatpush1.msra.mxu0 0.0
    %59 = vmatprep.subr.mxu0 0.0
    %60 = vmatpush1.msra.mxu0 0.0
    %61 = vmatprep.subr.mxu0 0.0
    %62 = vmatpush1.msra.mxu0 0.0
    %63 = vmatprep.subr.mxu0 0.0
    %64 = vmatpush1.msra.mxu0 0.0
    %65 = vmatprep.subr.mxu0 0.0
    %66 = vmatpush1.msra.mxu0 0.0
    %67 = vmatprep.subr.mxu0 0.0
    %68 = vmatpush1.msra.mxu0 0.0
    %69 = vmatprep.subr.mxu0 0.0
    %70 = vmatpush1.msra.mxu0 0.0
    %71 = vmatprep.subr.mxu0 0.0
    %72 = vmatpush1.msra.mxu0 0.0
    %73 = vmatprep.subr.mxu0 0.0
    %74 = vmatpush1.msra.mxu0 0.0
    %75 = vmatprep.subr.mxu0 0.0
    %76 = vmatpush1.msra.mxu0 0.0
    %77 = vmatprep.subr.mxu0 0.0
    %78 = vmatpush1.msra.mxu0 0.0
    %79 = vmatprep.subr.mxu0 0.0
    %80 = vmatpush1.msra.mxu0 0.0
    %81 = vmatprep.subr.mxu0 0.0
    %82 = vmatpush1.msra.mxu0 0.0
    %83 = vmatprep.subr.mxu0 0.0
    %84 = vmatpush1.msra.mxu0 0.0
    %85 = vmatprep.subr.mxu0 0.0
    %86 = vmatpush1.msra.mxu0 0.0
    %87 = vmatprep.subr.mxu0 0.0
    %88 = vmatpush1.msra.mxu0 0.0
    %89 = vmatprep.subr.mxu0 0.0
    %90 = vmatpush1.msra.mxu0 0.0
    %91 = vmatprep.subr.mxu0 0.0
    %92 = vmatpush1.msra.mxu0 0.0
    %93 = vmatprep.subr.mxu0 0.0
    %94 = vmatpush1.msra.mxu0 0.0
    %95 = vmatprep.subr.mxu0 0.0
    %96 = vmatpush1.msra.mxu0 0.0
    %97 = vmatprep.subr.mxu0 0.0
    %98 = vmatpush1.msra.mxu0 0.0
    %99 = vmatprep.subr.mxu0 0.0
    %100 = vmatpush1.msra.mxu0 0.0
    %101 = vmatprep.subr.mxu0 0.0
    %102 = vmatpush1.msra.mxu0 0.0
    %103 = vmatprep.subr.mxu0 0.0
    %104 = vmatpush1.msra.mxu0 0.0
    %105 = vmatprep.subr.mxu0 0.0
    %106 = vmatpush1.msra.mxu0 0.0
    %107 = vmatprep.mubr.f32.mxu0 0.0
    %108 = vmatmul.mubr.f32.gmra.mrb[0].mxu0 %v41
    %v109 = vpop.f32.mrb[0].mxu0
    %v110 = vadd.f32 0.0, %v109
    %v111 = vpop.f32.mrb[0].mxu0
    %v112 = vadd.f32 0.0, %v111
    %113 = vdwg.mxu0
    %114 = vst [vmem:[#allocation7] sm:$0xff] %v110
    %115 = vst [vmem:[#allocation7 + $0x8] sm:$0xff] %v112
    // Predicated region
    $region18: #{tpu_custom_call.1} parent=1 // pred_check
      _
    $region19: #{tpu_custom_call.1} parent=1 // pred_check_branch
      %117 = sbr.rel (0) target = $region21
    $region20: #{tpu_custom_call.1} parent=1 // pred_region
      %s119 = ssub.s32 256, 256
      %120 = vsyncadd [#allocation4], %s119
      %s122 = sshll.u32 [#allocation7], 4
      %s123 = int_to_ptr.vmem [resolvable:$true] %s122
      %125 = dma.vmem_to_hbm [thread:$0]  %s123, 256, %s2, [#allocation4]
    $region21: #{tpu_custom_call.1} parent=1 // pred_fallthru
      _
    // Predicated region
    $region22: #{tpu_custom_call.1} parent=1 // pred_check
      _
    $region23: #{tpu_custom_call.1} parent=1 // pred_check_branch
      %127 = sbr.rel (0) target = $region25
    $region24: #{tpu_custom_call.1} parent=1 // pred_region
      %128 = dma.done [#allocation4], 256
    $region25: #{tpu_custom_call.1} parent=1 // pred_fallthru
      _
    %129 = vsyncpa [#allocation3], 1
    %130 = vsyncpa [#allocation6], 1
    %131 = vsyncpa [#allocation4], 1

</llo_original>
